<compile_context>
chip_gen: v7x
topology: tpu7x:2x2x1
jax: 0.10.0
libtpu: 0.0.40
codegen_flags: <defaults>
</compile_context>

<pallas_src>
import functools

import jax
import jax.numpy as jnp
from jax.experimental import pallas as pl
from jax.experimental.pallas import tpu as pltpu


def _magloss_kernel(ct_ref, side_ref, out_ref, m_scr, l_scr,
                    *, scale, inv_ua2, lambda_g, num_classes, tc):
    """One (batch_tile, class_tile) grid step.

    ct_ref:   [TB, TC] cos_theta tile (f32 or bf16; upcast here)
    side_ref: [TB, 4]  packed f32: [ctm@target, target_id, x_norm, alpha[target]]
    out_ref:  [TB, 1]  per-sample weighted loss (written on last class tile)
    m_scr/l_scr: [TB, 1] online-logsumexp running max / running exp-sum
    """
    c_idx = pl.program_id(1)
    n_c = pl.num_programs(1)

    @pl.when(c_idx == 0)
    def _init():
        m_scr[...] = jnp.full_like(m_scr, -jnp.inf)
        l_scr[...] = jnp.zeros_like(l_scr)

    ct = ct_ref[...].astype(jnp.float32)                    # [TB, TC]
    ctm_tgt = side_ref[:, 0:1]                              # [TB, 1] f32
    tgt = side_ref[:, 1:2].astype(jnp.int32)                # exact (< 2^24)

    # Tile-local target comparison: one [TB,1] subtract instead of a
    # per-element global-column add.
    tgt_local = tgt - c_idx * tc                            # [TB, 1]
    col_local = jax.lax.broadcasted_iota(jnp.int32, ct.shape, 1)
    is_tgt = col_local == tgt_local                         # [TB, TC] bool

    # output = scale * (target lane replaced by cos_theta_m[target])
    logits = scale * jnp.where(is_tgt, ctm_tgt, ct)         # single scale mul

    def accumulate(lg):
        tile_max = jnp.max(lg, axis=1, keepdims=True)       # [TB, 1]
        m_new = jnp.maximum(m_scr[...], tile_max)
        l_scr[...] = (l_scr[...] * jnp.exp(m_scr[...] - m_new)
                      + jnp.sum(jnp.exp(lg - m_new), axis=1, keepdims=True))
        m_scr[...] = m_new

    if num_classes % tc != 0:
        # Only the last class tile is ragged -> gate the -inf masking so
        # non-edge tiles pay no extra compare+select per element.
        last = n_c - 1

        @pl.when(c_idx != last)
        def _full_tile():
            accumulate(logits)

        @pl.when(c_idx == last)
        def _edge_tile():
            limit_local = num_classes - c_idx * tc          # scalar
            masked = jnp.where(col_local < limit_local, logits, -jnp.inf)
            accumulate(masked)
    else:
        accumulate(logits)

    @pl.when(c_idx == n_c - 1)
    def _finalize():
        lse = m_scr[...] + jnp.log(l_scr[...])              # [TB, 1]
        tgt_logit = scale * ctm_tgt                         # [TB, 1]
        loss_id = lse - tgt_logit                           # cross entropy
        # Clamp so padded batch rows (which may read garbage x_norm) never
        # produce inf/NaN; those rows are discarded by the wrapper anyway.
        xn = jnp.maximum(side_ref[:, 2:3], 1e-6)
        loss_g = inv_ua2 * xn + 1.0 / xn                    # [TB, 1]
        alpha = side_ref[:, 3:4]
        out_ref[...] = (loss_id + lambda_g * loss_g) * alpha


def weight_class_mag_loss(cos_theta, cos_theta_m, target, x_norm, alpha,
                          *, l_a=10, u_a=110, scale=64, lambda_g=20,
                          block_b=256, block_c=8192):
    """Pallas implementation of WeightClassMagLoss.forward.

    Args:
      cos_theta:   [B, C] float32 or bfloat16 cosine logits (the only large
                   stream; bf16 halves HBM traffic and is upcast in-kernel)
      cos_theta_m: [B, C] margin-adjusted cosine logits
      target:      [B]    integer class ids
      x_norm:      [B]    float32 feature norms
      alpha:       [C]    float32 per-class weights
    Returns:
      scalar float32 loss
    """
    del l_a  # unused in the forward pass (kept for signature parity)
    B, C = cos_theta.shape
    tgt = target.astype(jnp.int32)

    # Only the target column of cos_theta_m and the per-sample alpha are ever
    # used -> gather them here instead of streaming [B, C] / [C] in the kernel.
    # TODO(synk): in production compute ctm_tgt upstream (cos(acos(ct_tgt)+m))
    # so the full [B, C] cos_theta_m never materializes / is re-read by this
    # gather.
    ctm_tgt = jnp.take_along_axis(
        cos_theta_m.astype(jnp.float32), tgt[:, None], axis=1)        # [B, 1]
    alpha_sel = alpha.astype(jnp.float32)[tgt][:, None]                # [B, 1]
    xn2d = x_norm.astype(jnp.float32)[:, None]                         # [B, 1]

    # Pack the four [B,1] side inputs into one [B,4] f32 array -> one DMA /
    # one BlockSpec.  Class ids are exactly representable in f32 (< 2^24) and
    # converted back with astype inside the kernel.
    side = jnp.concatenate(
        [ctm_tgt, tgt[:, None].astype(jnp.float32), xn2d, alpha_sel], axis=1)

    # Batch tile: full dim when tiny, otherwise guarantee >= 2 batch blocks so
    # the 'parallel' axis shards across v7x's two TensorCores; keep a multiple
    # of 16 so bf16 cos_theta tiles satisfy the (16, 128) layout constraint.
    if B <= 16:
        tb = B
    else:
        half = -(-B // 2)                      # ceil(B / 2)
        half = -(-half // 16) * 16             # round up to multiple of 16
        tb = min(block_b, half)
    # Class tile: full dim when small, otherwise a big (128-aligned) tile so
    # the double-buffered cos_theta stream is 8-16 MiB (f32) / 4-8 MiB (bf16),
    # comfortably under the 40 MiB VMEM budget even on v7x.
    tc = C if C <= block_c else block_c

    grid = (pl.cdiv(B, tb), pl.cdiv(C, tc))

    kernel = functools.partial(
        _magloss_kernel,
        scale=float(scale),
        inv_ua2=1.0 / (float(u_a) * float(u_a)),
        lambda_g=float(lambda_g),
        num_classes=C,
        tc=tc)

    per_sample = pl.pallas_call(
        kernel,
        out_shape=jax.ShapeDtypeStruct((B, 1), jnp.float32),
        grid=grid,
        in_specs=[
            pl.BlockSpec((tb, tc), lambda b, c: (b, c)),   # cos_theta tile
            pl.BlockSpec((tb, 4), lambda b, c: (b, 0)),    # packed side inputs
        ],
        out_specs=pl.BlockSpec((tb, 1), lambda b, c: (b, 0)),
        scratch_shapes=[
            pltpu.VMEM((tb, 1), jnp.float32),   # running max
            pltpu.VMEM((tb, 1), jnp.float32),   # running exp-sum
        ],
        compiler_params=pltpu.CompilerParams(
            dimension_semantics=("parallel", "arbitrary"),
            vmem_limit_bytes=40 * 1024 * 1024),
    )(cos_theta, side)

    # Tiny [B] reduction; done in the wrapper so the batch grid axis stays
    # 'parallel' (shardable across v7x's two TensorCores).
    return jnp.mean(per_sample)


def compute_alpha_from_counts(label_counts):
    """Deterministic replacement for _compute_alpha (CSV-derived class counts)."""
    # TODO(synk): original module reads class counts from a CSV via pandas;
    # replaced with in-script synthetic counts using the identical formula.
    counts = jnp.asarray(label_counts, dtype=jnp.float32)
    total = jnp.sum(counts)
    alpha = 1.0 - counts / total
    alpha = (alpha - alpha.min()) / (alpha.max() - alpha.min() + 1e-8)
    min_alpha, max_alpha = 0.3, 1.0
    return alpha * (max_alpha - min_alpha) + min_alpha


def _reference(cos_theta, cos_theta_m, target, x_norm, alpha,
               *, u_a=110, scale=64, lambda_g=20):
    # Pure-JAX reference mirroring the PyTorch forward.
    ct = scale * cos_theta.astype(jnp.float32)
    ctm = scale * cos_theta_m.astype(jnp.float32)
    one_hot = jax.nn.one_hot(target, ct.shape[1], dtype=ct.dtype)
    output = one_hot * ctm + (1.0 - one_hot) * ct
    logz = jax.nn.logsumexp(output, axis=1)
    loss_id = logz - output[jnp.arange(output.shape[0]), target]
    loss_g = (1.0 / u_a**2) * x_norm + 1.0 / x_norm
    a = alpha[target]
    return jnp.mean((loss_id + lambda_g * loss_g) * a)


def _run_case(key, B, C, block_c, dtype=jnp.float32, tol=1e-4):
    k1, k2, k3, k4 = jax.random.split(key, 4)
    cos_theta = jax.random.uniform(k1, (B, C), jnp.float32, -1.0, 1.0)
    # cos_theta_m is the margin-adjusted cosine (slightly smaller at target).
    cos_theta_m = cos_theta - jax.random.uniform(k2, (B, C), jnp.float32, 0.0, 0.1)
    target = jax.random.randint(k3, (B,), 0, C, dtype=jnp.int32)
    x_norm = jax.random.uniform(k4, (B,), jnp.float32, 10.0, 110.0)

    # Optional bf16 streaming of the large input (halves HBM traffic).
    cos_theta = cos_theta.astype(dtype)
    cos_theta_m = cos_theta_m.astype(dtype)

    # Synthetic per-class counts standing in for the CSV label histogram.
    label_counts = jnp.arange(1, C + 1, dtype=jnp.float32) * 10.0
    alpha = compute_alpha_from_counts(label_counts)

    loss = weight_class_mag_loss(cos_theta, cos_theta_m, target, x_norm, alpha,
                                 block_c=block_c)
    loss = jax.block_until_ready(loss)
    # Reference runs on the same (possibly bf16-quantized) inputs upcast to f32
    # so the comparison isolates kernel error from input quantization.
    ref = _reference(cos_theta, cos_theta_m, target, x_norm, alpha)
    assert jnp.allclose(loss, ref, rtol=tol, atol=tol), (B, C, loss, ref)


if __name__ == "__main__":
    key = jax.random.PRNGKey(0)
    keys = jax.random.split(key, 4)

    # 1) Small single-tile case (full-dim blocks).
    _run_case(keys[0], B=8, C=16, block_c=8192)
    # 2) Multiple class tiles -> exercises the online logsumexp across the grid.
    _run_case(keys[1], B=16, C=384, block_c=128)
    # 3) Non-divisible class count -> exercises the gated edge-tile masking.
    _run_case(keys[2], B=8, C=200, block_c=128)
    # 4) Multiple batch blocks (B % tb != 0) + bf16 streaming of cos_theta.
    _run_case(keys[3], B=40, C=384, block_c=128, dtype=jnp.bfloat16, tol=2e-3)

    print("KERNEL_OK")
</pallas_src>

<mosaic_0001>
module attributes {stable_mosaic.version = 11 : i64} {
  func.func @_magloss_kernel(%arg0: i32, %arg1: i32, %arg2: memref<8x16xf32, #tpu.memory_space<vmem>>, %arg3: memref<8x4xf32, #tpu.memory_space<vmem>>, %arg4: memref<8x1xf32, #tpu.memory_space<vmem>>, %arg5: memref<8x1xf32, #tpu.memory_space<vmem>>, %arg6: memref<8x1xf32, #tpu.memory_space<vmem>>) attributes {dimension_semantics = [#tpu.dimension_semantics<parallel>, #tpu.dimension_semantics<arbitrary>], iteration_bounds = array<i64: 1, 1>, scalar_prefetch = 0 : i64, scratch_operands = 2 : i64, tpu.core_type = #tpu.core_type<tc>, window_params = [{transform_indices = @transform_0, window_bounds = array<i64: 8, 16>}, {transform_indices = @transform_1, window_bounds = array<i64: 8, 4>}, {transform_indices = @transform_2, window_bounds = array<i64: 8, 1>}]} {
    %c0_i32 = arith.constant 0 : i32
    %0 = arith.cmpi eq, %arg1, %c0_i32 : i32
    %1 = arith.extui %0 : i1 to i32
    %c0_i32_0 = arith.constant 0 : i32
    %2 = arith.cmpi ne, %1, %c0_i32_0 : i32
    scf.if %2 {
      %cst_19 = arith.constant 0xFF800000 : f32
      %38 = vector.broadcast %cst_19 : f32 to vector<8x1xf32>
      %c0_20 = arith.constant 0 : index
      %c0_21 = arith.constant 0 : index
      %39 = vector.load %arg5[%c0_20, %c0_21] : memref<8x1xf32, #tpu.memory_space<vmem>>, vector<8x1xf32>
      tpu.vector_store %arg5[%c0_20, %c0_21], %38 {strides = array<i32>} : memref<8x1xf32, #tpu.memory_space<vmem>>, vector<8x1xf32>,
      %cst_22 = arith.constant 0.000000e+00 : f32
      %40 = vector.broadcast %cst_22 : f32 to vector<8x1xf32>
      %c0_23 = arith.constant 0 : index
      %c0_24 = arith.constant 0 : index
      %41 = vector.load %arg6[%c0_23, %c0_24] : memref<8x1xf32, #tpu.memory_space<vmem>>, vector<8x1xf32>
      tpu.vector_store %arg6[%c0_23, %c0_24], %40 {strides = array<i32>} : memref<8x1xf32, #tpu.memory_space<vmem>>, vector<8x1xf32>,
    } else {
    }
    %c0 = arith.constant 0 : index
    %c0_1 = arith.constant 0 : index
    %3 = vector.load %arg2[%c0, %c0_1] : memref<8x16xf32, #tpu.memory_space<vmem>>, vector<8x16xf32>
    %c0_2 = arith.constant 0 : index
    %c0_3 = arith.constant 0 : index
    %4 = vector.load %arg3[%c0_2, %c0_3] : memref<8x4xf32, #tpu.memory_space<vmem>>, vector<8x1xf32>
    %c0_4 = arith.constant 0 : index
    %c1 = arith.constant 1 : index
    %5 = vector.load %arg3[%c0_4, %c1] : memref<8x4xf32, #tpu.memory_space<vmem>>, vector<8x1xf32>
    %6 = arith.fptosi %5 : vector<8x1xf32> to vector<8x1xi32>
    %c16_i32 = arith.constant 16 : i32
    %7 = arith.muli %arg1, %c16_i32 : i32
    %8 = vector.broadcast %7 : i32 to vector<8x1xi32>
    %9 = arith.subi %6, %8 : vector<8x1xi32>
    %10 = tpu.iota {dimensions = array<i32: 1>} : vector<8x16xi32>
    %11 = vector.broadcast %9 : vector<8x1xi32> to vector<8x16xi32>
    %12 = arith.cmpi eq, %10, %11 : vector<8x16xi32>
    %13 = vector.shape_cast %4 : vector<8x1xf32> to vector<8x1xf32>
    %14 = vector.broadcast %13 : vector<8x1xf32> to vector<8x16xf32>
    %15 = arith.select %12, %14, %3 : vector<8x16xi1>, vector<8x16xf32>
    %cst = arith.constant 6.400000e+01 : f32
    %16 = vector.broadcast %cst : f32 to vector<8x16xf32>
    %17 = arith.mulf %16, %15 : vector<8x16xf32>
    %cst_5 = arith.constant dense<0xFF800000> : vector<8xf32>
    %18 = vector.multi_reduction <maximumf>, %17, %cst_5 [1] : vector<8x16xf32> to vector<8xf32>
    %19 = vector.shape_cast %18 : vector<8xf32> to vector<8x1xf32>
    %c0_6 = arith.constant 0 : index
    %c0_7 = arith.constant 0 : index
    %20 = vector.load %arg5[%c0_6, %c0_7] : memref<8x1xf32, #tpu.memory_space<vmem>>, vector<8x1xf32>
    %21 = arith.maximumf %20, %19 : vector<8x1xf32>
    %c0_8 = arith.constant 0 : index
    %c0_9 = arith.constant 0 : index
    %22 = vector.load %arg6[%c0_8, %c0_9] : memref<8x1xf32, #tpu.memory_space<vmem>>, vector<8x1xf32>
    %c0_10 = arith.constant 0 : index
    %c0_11 = arith.constant 0 : index
    %23 = vector.load %arg5[%c0_10, %c0_11] : memref<8x1xf32, #tpu.memory_space<vmem>>, vector<8x1xf32>
    %24 = arith.subf %23, %21 : vector<8x1xf32>
    %25 = math.exp %24 : vector<8x1xf32>
    %26 = arith.mulf %22, %25 : vector<8x1xf32>
    %27 = vector.broadcast %21 : vector<8x1xf32> to vector<8x16xf32>
    %28 = arith.subf %17, %27 : vector<8x16xf32>
    %29 = math.exp %28 : vector<8x16xf32>
    %cst_12 = arith.constant dense<0.000000e+00> : vector<8xf32>
    %30 = vector.multi_reduction <add>, %29, %cst_12 [1] : vector<8x16xf32> to vector<8xf32>
    %31 = vector.shape_cast %30 : vector<8xf32> to vector<8x1xf32>
    %32 = arith.addf %26, %31 : vector<8x1xf32>
    %c0_13 = arith.constant 0 : index
    %c0_14 = arith.constant 0 : index
    %33 = vector.load %arg6[%c0_13, %c0_14] : memref<8x1xf32, #tpu.memory_space<vmem>>, vector<8x1xf32>
    tpu.vector_store %arg6[%c0_13, %c0_14], %32 {strides = array<i32>} : memref<8x1xf32, #tpu.memory_space<vmem>>, vector<8x1xf32>,
    %c0_15 = arith.constant 0 : index
    %c0_16 = arith.constant 0 : index
    %34 = vector.load %arg5[%c0_15, %c0_16] : memref<8x1xf32, #tpu.memory_space<vmem>>, vector<8x1xf32>
    tpu.vector_store %arg5[%c0_15, %c0_16], %21 {strides = array<i32>} : memref<8x1xf32, #tpu.memory_space<vmem>>, vector<8x1xf32>,
    %c0_i32_17 = arith.constant 0 : i32
    %35 = arith.cmpi eq, %arg1, %c0_i32_17 : i32
    %36 = arith.extui %35 : i1 to i32
    %c0_i32_18 = arith.constant 0 : i32
    %37 = arith.cmpi ne, %36, %c0_i32_18 : i32
    scf.if %37 {
      %c0_19 = arith.constant 0 : index
      %c0_20 = arith.constant 0 : index
      %38 = vector.load %arg5[%c0_19, %c0_20] : memref<8x1xf32, #tpu.memory_space<vmem>>, vector<8x1xf32>
      %c0_21 = arith.constant 0 : index
      %c0_22 = arith.constant 0 : index
      %39 = vector.load %arg6[%c0_21, %c0_22] : memref<8x1xf32, #tpu.memory_space<vmem>>, vector<8x1xf32>
      %40 = math.log %39 : vector<8x1xf32>
      %41 = arith.addf %38, %40 : vector<8x1xf32>
      %cst_23 = arith.constant 6.400000e+01 : f32
      %42 = vector.broadcast %cst_23 : f32 to vector<8x1xf32>
      %43 = arith.mulf %42, %4 : vector<8x1xf32>
      %44 = arith.subf %41, %43 : vector<8x1xf32>
      %c0_24 = arith.constant 0 : index
      %c2 = arith.constant 2 : index
      %45 = vector.load %arg3[%c0_24, %c2] : memref<8x4xf32, #tpu.memory_space<vmem>>, vector<8x1xf32>
      %cst_25 = arith.constant 9.99999997E-7 : f32
      %46 = vector.broadcast %cst_25 : f32 to vector<8x1xf32>
      %47 = arith.maximumf %45, %46 : vector<8x1xf32>
      %cst_26 = arith.constant 8.26446266E-5 : f32
      %48 = vector.broadcast %cst_26 : f32 to vector<8x1xf32>
      %49 = arith.mulf %48, %47 : vector<8x1xf32>
      %cst_27 = arith.constant 1.000000e+00 : f32
      %50 = vector.broadcast %cst_27 : f32 to vector<8x1xf32>
      %51 = arith.divf %50, %47 : vector<8x1xf32>
      %52 = arith.addf %49, %51 : vector<8x1xf32>
      %c0_28 = arith.constant 0 : index
      %c3 = arith.constant 3 : index
      %53 = vector.load %arg3[%c0_28, %c3] : memref<8x4xf32, #tpu.memory_space<vmem>>, vector<8x1xf32>
      %cst_29 = arith.constant 2.000000e+01 : f32
      %54 = vector.broadcast %cst_29 : f32 to vector<8x1xf32>
      %55 = arith.mulf %54, %52 : vector<8x1xf32>
      %56 = arith.addf %44, %55 : vector<8x1xf32>
      %57 = arith.mulf %56, %53 : vector<8x1xf32>
      %c0_30 = arith.constant 0 : index
      %c0_31 = arith.constant 0 : index
      %58 = vector.load %arg4[%c0_30, %c0_31] : memref<8x1xf32, #tpu.memory_space<vmem>>, vector<8x1xf32>
      tpu.vector_store %arg4[%c0_30, %c0_31], %57 {strides = array<i32>} : memref<8x1xf32, #tpu.memory_space<vmem>>, vector<8x1xf32>,
    } else {
    }
    return
  }
  func.func @transform_0(%arg0: i32, %arg1: i32) -> (i32, i32) {
    %c0_i32 = arith.constant 0 : i32
    return %arg0, %arg1 : i32, i32
  }
  func.func @transform_1(%arg0: i32, %arg1: i32) -> (i32, i32) {
    %c0_i32 = arith.constant 0 : i32
    %c0_i32_0 = arith.constant 0 : i32
    return %arg0, %c0_i32 : i32, i32
  }
  func.func @transform_2(%arg0: i32, %arg1: i32) -> (i32, i32) {
    %c0_i32 = arith.constant 0 : i32
    %c0_i32_0 = arith.constant 0 : i32
    return %arg0, %c0_i32 : i32, i32
  }
}

</mosaic_0001>

<llo_original>
// kernel: tpu_custom_call.1
$region0: #{tpu_custom_call.1}
  #allocation0 [shape = 'u32[]', space=smem, size = 0x4, offset = 0x4, fixed_abs, tag = 'smem constant byte address 0x4 - core index']
  #allocation1 [shape = 'u32[144,128]{1,0:T(1,128)}', space=vmem, size = 0x12000, scoped, tag = 'internal scratch']
  #allocation2 [shape = 'f32[8,1]{1,0:T(8,128)}', space=vmem, size = 0x1000, scoped, tag = 'scratch operand']
  #allocation3 [shape = 'f32[8,1]{1,0:T(8,128)}', space=vmem, size = 0x1000, scoped, tag = 'scratch operand']
  %s0 = inlined_call_operand.vmem [shape: f32[8,16], index: 0, kind: input, shape index: {}]
  %s1 = inlined_call_operand.vmem [shape: f32[8,4], index: 1, kind: input, shape index: {}]
  %s2 = inlined_call_operand.vmem [shape: f32[8,1], index: 2, kind: output, shape index: {}]
  %s3 = sld [smem:[#allocation0]]
  $region26: #{tpu_custom_call.1} parent=0
    _
  %s5 = ssub.s32 1, %s3
  %s6 = scalar_select 0, %s5, %s3
  // Predicated region
  $region2: #{tpu_custom_call.1} parent=0 // pred_check
    _
  $region3: #{tpu_custom_call.1} parent=0 // pred_check_branch
    %8 = sbr.rel (0) target = $region5
  $region4: #{tpu_custom_call.1} parent=0 // pred_region
    _
  $region5: #{tpu_custom_call.1} parent=0 // pred_fallthru
    _
  // Predicated region
  $region6: #{tpu_custom_call.1} parent=0 // pred_check
    _
  $region7: #{tpu_custom_call.1} parent=0 // pred_check_branch
    %10 = sbr.rel (0) target = $region9
  $region8: #{tpu_custom_call.1} parent=0 // pred_region
    _
  $region9: #{tpu_custom_call.1} parent=0 // pred_fallthru
    _
  %p11 = scmp.eq.s32.totalorder 0, 0
  // Predicated region
  $region10: #{tpu_custom_call.1} parent=0 // pred_check
    %p12 = pneg %p11
  $region11: #{tpu_custom_call.1} parent=0 // pred_check_branch
    %14 = sbr.rel (%p12) target = $region13
  $region12: #{tpu_custom_call.1} parent=0 // pred_region
    %vm15 = vcmask 7168
    %16 = vst.msk [vmem:[#allocation2] sm:$0xff] %vm15, -inf
    %17 = vst.msk [vmem:[#allocation3] sm:$0xff] %vm15, 0.0
  $region13: #{tpu_custom_call.1} parent=0 // pred_fallthru
    _
  %v18 = vld [vmem:[%s0] sm:$0xff]
  %v19 = vld [vmem:[%s1] sm:$0xff]
  %v20 = vcvt.f32.s32.to.zero.pseudo %v19
  %s21 = smul.u32 0, 16
  %v22 = vstv %s21
  %v23 = vsub.s32 %v20, %v22
  %v24 = vlaneseq
  %v25 = vand.u32 %v24, 127
  %26 = vset.pattern.permute.xlu0 1
  %27 = vperm.xlu0 %26, %v23
  %v28 = vpop.permute.xlu0 %27
  %vm29 = vcmp.eq.s32.totalorder %v25, %v28
  %31 = vset.pattern.permute.xlu0 0
  %32 = vperm.xlu0 %31, %v19
  %v33 = vpop.permute.xlu0 %32
  %v35 = vsel %vm29, %v33, %v18
  %v36 = vmul.f32 %v35, 64.0
  %vm37 = vcmask 130048
  %v38 = vsel %vm37, %v36, -inf
  %39 = vmax.xlane.f32.xlu0 %v38
  %v40 = vpop.xlane.xlu0 %39
  %v41 = vld [vmem:[#allocation2] sm:$0xff]
  %v42 = vmax.f32 %v41, %v40
  %v43 = vld [vmem:[#allocation3] sm:$0xff]
  %v44 = vsub.f32 %v41, %v42
  %v45 = vmul.f32 %v44, 1.442695
  %v46 = vpow.pop %v45
  %v47 = vmul.f32 %v43, %v46
  %49 = vset.pattern.permute.xlu0 0
  %50 = vperm.xlu0 %49, %v42
  %v51 = vpop.permute.xlu0 %50
  %v53 = vsub.f32 %v36, %v51
  %v54 = vmul.f32 %v53, 1.442695
  %v55 = vpow.pop %v54
  %v56 = vsel %vm37, %v55, 0.0
  %57 = vadd.xlane.f32.xlu0 %v56
  %v58 = vpop.xlane.xlu0 %57
  %v59 = vadd.f32 %v47, %v58
  %vm60 = vcmask 7168
  %61 = vst.msk [vmem:[#allocation3] sm:$0xff] %vm60, %v59
  %62 = vst.msk [vmem:[#allocation2] sm:$0xff] %vm60, %v42
  // Predicated region
  $region14: #{tpu_custom_call.1} parent=0 // pred_check
    %p63 = pneg %p11
  $region15: #{tpu_custom_call.1} parent=0 // pred_check_branch
    %65 = sbr.rel (%p63) target = $region17
  $region16: #{tpu_custom_call.1} parent=0 // pred_region
    %v66 = vld [vmem:[#allocation2] sm:$0xff]
    %v67 = vld [vmem:[#allocation3] sm:$0xff]
    %v68 = vlog2.pop %v67
    %v69 = vmul.f32 %v68, 0.6931472
    %v70 = vadd.f32 %v66, %v69
    %v71 = vmul.f32 %v19, 64.0
    %v72 = vsub.f32 %v70, %v71
    %v73 = vld [vmem:[%s1] sm:$0xff]
    %v74 = vmax.f32 %v73, 1e-06
    %v75 = vmul.f32 %v74, 8.264463e-05
    %v76 = vrcp.pop %v74
    %v77 = vmul.f32 1.0, %v76
    %v78 = vadd.f32 %v75, %v77
    %v79 = vmul.f32 %v78, 20.0
    %81 = vrot.lane.b32.xlu0 %v79, 126
    %v82 = vpop.permute.xlu0 %81
    %v84 = vadd.f32 %v72, %v82
    %86 = vrot.lane.b32.xlu0 %v73, 125
    %v87 = vpop.permute.xlu0 %86
    %v89 = vmul.f32 %v84, %v87
    %90 = vst.msk [vmem:[%s2] sm:$0xff] %vm60, %v89
  $region17: #{tpu_custom_call.1} parent=0 // pred_fallthru
    _
  // Predicated region
  $region18: #{tpu_custom_call.1} parent=0 // pred_check
    _
  $region19: #{tpu_custom_call.1} parent=0 // pred_check_branch
    %92 = sbr.rel (0) target = $region21
  $region20: #{tpu_custom_call.1} parent=0 // pred_region
    _
  $region21: #{tpu_custom_call.1} parent=0 // pred_fallthru
    _
  // Predicated region
  $region22: #{tpu_custom_call.1} parent=0 // pred_check
    _
  $region23: #{tpu_custom_call.1} parent=0 // pred_check_branch
    %94 = sbr.rel (0) target = $region25
  $region24: #{tpu_custom_call.1} parent=0 // pred_region
    _
  $region25: #{tpu_custom_call.1} parent=0 // pred_fallthru
    _

</llo_original>
